<compile_context>
chip_gen: v7x
topology: tpu7x:2x2x1
jax: 0.10.0
libtpu: 0.0.40
codegen_flags: <defaults>
</compile_context>

<pallas_src>
import jax
import jax.numpy as jnp
from jax.experimental import pallas as pl
from jax.experimental.pallas import tpu as pltpu

_SP_THRESHOLD = 20.0          # PyTorch softplus numerical threshold (beta=1)
_LANE = 1024                  # lane-dense last dim (multiple of 128 -> unmasked vst)
_TARGET_BLOCK_BYTES = 4 << 20  # ~4 MiB per block regardless of dtype
_MIN_PALLAS_ELEMS = 1 << 15   # below this, a fused XLA elementwise op is faster


def _softplus_jnp(x):
    """Numerically stable softplus(x, beta=1), matching torch.nn.functional.softplus."""
    thresh = jnp.asarray(_SP_THRESHOLD, x.dtype)
    safe = jnp.minimum(x, thresh)
    if x.dtype == jnp.bfloat16:
        # bf16 EUP on v6e/v7x: keep the transcendentals in bf16 (result is bf16 anyway).
        sp = jnp.log1p(jnp.exp(safe))
    else:
        sp = jnp.log1p(jnp.exp(safe.astype(jnp.float32))).astype(x.dtype)
    # beta = 1, so beta*x == x; above the threshold softplus(x) == x (to fp precision).
    return jnp.where(x > thresh, x, sp)


def _softplus_kernel(x_ref, o_ref):
    o_ref[...] = _softplus_jnp(x_ref[...])


def _sublane_multiple(dtype):
    return {4: 8, 2: 16, 1: 32}.get(jnp.dtype(dtype).itemsize, 8)


def _pick_tile_rows(rows, dtype):
    sub = _sublane_multiple(dtype)
    if rows < sub:
        # Tiny row dim: single block equal to the full array dim (legal per
        # the "or equal the full array dims" clause of the (8,128) rule).
        return rows
    itemsize = jnp.dtype(dtype).itemsize
    tile = max(sub, (_TARGET_BLOCK_BYTES // (_LANE * itemsize)) // sub * sub)
    if rows <= tile:
        # Mid-size input: split into >=2 grid steps so both v7x TensorCores
        # get work instead of a single-step grid on one core.
        half = -(-rows // 2)
        tile = max(sub, -(-half // sub) * sub)
    return tile


def _softplus_pallas_2d(x2d):
    rows = x2d.shape[0]
    tile_r = _pick_tile_rows(rows, x2d.dtype)
    grid = (pl.cdiv(rows, tile_r),)  # ragged last block is masked by Pallas
    return pl.pallas_call(
        _softplus_kernel,
        out_shape=jax.ShapeDtypeStruct(x2d.shape, x2d.dtype),
        grid=grid,
        in_specs=[pl.BlockSpec((tile_r, _LANE), lambda i: (i, 0))],
        out_specs=pl.BlockSpec((tile_r, _LANE), lambda i: (i, 0)),
        compiler_params=pltpu.CompilerParams(
            dimension_semantics=("parallel",),
            # 4 MiB blocks * (in + out) * double-buffering = 16 MiB, which is
            # exactly v5e's default scoped limit -> raise it explicitly.
            vmem_limit_bytes=32 << 20,
        ),
    )(x2d)


def softplus_fixed_gradient_forward(x, threshold=-2.19722, fixed_grad=0.1,
                                    *, min_pallas_elems=_MIN_PALLAS_ELEMS):
    """Forward of SoftPlusFixedGradient: softplus(x, beta=1).

    threshold / fixed_grad only affect the module's backward pass, so they are
    unused in the forward.
    """
    del threshold, fixed_grad  # backward-only parameters
    n = x.size
    if n == 0:
        return x
    if n < min_pallas_elems:
        # Tiny tensors: fixed pallas_call + reshape overhead dominates; let XLA fuse it.
        return _softplus_jnp(x)

    orig_shape = x.shape
    flat = x.reshape(-1)
    bulk_rows = n // _LANE
    rem = n - bulk_rows * _LANE

    pieces = []
    if bulk_rows > 0:
        bulk = flat if rem == 0 else flat[: bulk_rows * _LANE]
        out2d = _softplus_pallas_2d(bulk.reshape(bulk_rows, _LANE))
        pieces.append(out2d.reshape(-1))
    if rem > 0:
        # Sub-1024-element ragged tail: plain jnp (avoids a whole-array pad + slice).
        pieces.append(_softplus_jnp(flat[bulk_rows * _LANE:]))

    out = pieces[0] if len(pieces) == 1 else jnp.concatenate(pieces)
    return out.reshape(orig_shape)


if __name__ == "__main__":
    key = jax.random.PRNGKey(0)
    k1, k2, k3 = jax.random.split(key, 3)

    # Small NCHW activation-like inputs. min_pallas_elems=0 forces the Pallas path.
    x1 = jax.random.normal(k1, (2, 4, 16, 16), dtype=jnp.float32) * 5.0   # n % 1024 == 0
    x2 = jax.random.normal(k2, (3, 5, 17, 11), dtype=jnp.float32) * 5.0   # ragged tail path
    x3 = (jax.random.normal(k3, (2, 4, 16, 16), dtype=jnp.float32) * 5.0
          ).astype(jnp.bfloat16)                                          # bf16 EUP path

    ok = True
    for x in (x1, x2, x3):
        y = softplus_fixed_gradient_forward(x, min_pallas_elems=0)
        y = jax.block_until_ready(y)

        xf = x.astype(jnp.float32)
        ref = jnp.where(xf > _SP_THRESHOLD, xf,
                        jnp.log1p(jnp.exp(jnp.minimum(xf, _SP_THRESHOLD))))
        tol = 1e-5 if x.dtype == jnp.float32 else 2e-2
        ok &= bool(y.shape == x.shape and y.dtype == x.dtype)
        ok &= bool(jnp.allclose(y.astype(jnp.float32), ref, atol=tol, rtol=tol))

    assert ok
    print("KERNEL_OK")
</pallas_src>

<mosaic_0001>
module attributes {stable_mosaic.version = 11 : i64} {
  func.func @_softplus_kernel(%arg0: i32, %arg1: memref<2x1024xf32, #tpu.memory_space<vmem>>, %arg2: memref<2x1024xf32, #tpu.memory_space<vmem>>) attributes {dimension_semantics = [#tpu.dimension_semantics<parallel>], iteration_bounds = array<i64: 1>, scalar_prefetch = 0 : i64, scratch_operands = 0 : i64, tpu.core_type = #tpu.core_type<tc>, window_params = [{transform_indices = @transform_0, window_bounds = array<i64: 2, 1024>}, {transform_indices = @transform_1, window_bounds = array<i64: 2, 1024>}]} {
    %c0 = arith.constant 0 : index
    %c0_0 = arith.constant 0 : index
    %0 = vector.load %arg1[%c0, %c0_0] : memref<2x1024xf32, #tpu.memory_space<vmem>>, vector<2x1024xf32>
    %cst = arith.constant 2.000000e+01 : f32
    %1 = vector.broadcast %cst : f32 to vector<2x1024xf32>
    %2 = arith.minimumf %0, %1 : vector<2x1024xf32>
    %3 = math.exp %2 : vector<2x1024xf32>
    %4 = math.log1p %3 : vector<2x1024xf32>
    %cst_1 = arith.constant 2.000000e+01 : f32
    %5 = vector.broadcast %cst_1 : f32 to vector<2x1024xf32>
    %6 = arith.cmpf ogt, %0, %5 : vector<2x1024xf32>
    %7 = arith.select %6, %0, %4 : vector<2x1024xi1>, vector<2x1024xf32>
    %c0_2 = arith.constant 0 : index
    %c0_3 = arith.constant 0 : index
    %8 = vector.load %arg2[%c0_2, %c0_3] : memref<2x1024xf32, #tpu.memory_space<vmem>>, vector<2x1024xf32>
    tpu.vector_store %arg2[%c0_2, %c0_3], %7 {strides = array<i32>} : memref<2x1024xf32, #tpu.memory_space<vmem>>, vector<2x1024xf32>,
    return
  }
  func.func @transform_0(%arg0: i32) -> (i32, i32) {
    %c0_i32 = arith.constant 0 : i32
    %c0_i32_0 = arith.constant 0 : i32
    return %arg0, %c0_i32 : i32, i32
  }
  func.func @transform_1(%arg0: i32) -> (i32, i32) {
    %c0_i32 = arith.constant 0 : i32
    %c0_i32_0 = arith.constant 0 : i32
    return %arg0, %c0_i32 : i32, i32
  }
}

</mosaic_0001>

<llo_original>
// kernel: tpu_custom_call.1
$region0: #{tpu_custom_call.1}
  #allocation0 [shape = 'u32[]', space=smem, size = 0x4, offset = 0x4, fixed_abs, tag = 'smem constant byte address 0x4 - core index']
  #allocation1 [shape = 'u32[144,128]{1,0:T(1,128)}', space=vmem, size = 0x12000, scoped, tag = 'internal scratch']
  %s0 = inlined_call_operand.hbm [shape: f32[2,1024], index: 0, kind: input, shape index: {}]
  %s1 = inlined_call_operand.hbm [shape: f32[2,1024], index: 1, kind: output, shape index: {}]
  %s2 = sld [smem:[#allocation0]]
  $region18: #{tpu_custom_call.1} parent=0
    _
  %s4 = ssub.s32 1, %s2
  %s5 = scalar_select 0, %s4, %s2
  $region1: #{tpu_custom_call.1} parent=0
    #allocation2 [shape = 'u8[8192]{0}', space=vmem, size = 0x2000, scoped, tag = 'input window, operand 0, single buffered']
    #allocation3 [shape = 's32[1]{0}', space=sflag, size = 0x4, scoped, tag = 'scoped memory for tpu_custom_call.1']
    #allocation4 [shape = 's32[1]{0}', space=sflag, size = 0x4, scoped, tag = 'scoped memory for tpu_custom_call.1']
    #allocation5 [shape = 'u8[8192]{0}', space=vmem, size = 0x2000, scoped, tag = 'output window, operand 0, single buffered']
    %6 = vsyncpa [#allocation3], 0
    %7 = vsyncpa [#allocation4], 0
    // Predicated region
    $region2: #{tpu_custom_call.1} parent=1 // pred_check
      _
    $region3: #{tpu_custom_call.1} parent=1 // pred_check_branch
      %9 = sbr.rel (0) target = $region5
    $region4: #{tpu_custom_call.1} parent=1 // pred_region
      %s11 = ssub.s32 256, 256
      %12 = vsyncadd [#allocation3], %s11
      %s14 = sshll.u32 [#allocation2], 4
      %s15 = int_to_ptr.vmem [resolvable:$true] %s14
      %17 = dma.hbm_to_vmem [thread:$0]  %s0, 256, %s15, [#allocation3]
    $region5: #{tpu_custom_call.1} parent=1 // pred_fallthru
      _
    // Predicated region
    $region6: #{tpu_custom_call.1} parent=1 // pred_check
      _
    $region7: #{tpu_custom_call.1} parent=1 // pred_check_branch
      %19 = sbr.rel (0) target = $region9
    $region8: #{tpu_custom_call.1} parent=1 // pred_region
      %20 = dma.done [#allocation3], 256
    $region9: #{tpu_custom_call.1} parent=1 // pred_fallthru
      _
    %v21 = vld [vmem:[#allocation2] sm:$0xff]
    %v22 = vld [vmem:[#allocation2 + $0x8] sm:$0xff]
    %v23 = vmin.f32 %v21, 20.0
    %v24 = vmin.f32 %v22, 20.0
    %v25 = vmul.f32 %v23, 1.442695
    %v26 = vpow.pop %v25
    %v27 = vmul.f32 %v24, 1.442695
    %v28 = vpow.pop %v27
    %v29 = vadd.f32 %v26, 1.0
    %v30 = vlog2.pop %v29
    %v31 = vmul.f32 %v30, 0.6931472
    %v32 = vmul.f32 -0.5, %v26
    %v33 = vadd.f32 %v32, 1.0
    %v34 = vmul.f32 %v33, %v26
    %v35 = vand.u32 2147483647, %v26
    %vm36 = vcmp.lt.f32.partialorder %v35, 0.0004427343
    %v37 = vsel %vm36, %v34, %v31
    %v38 = vadd.f32 %v28, 1.0
    %v39 = vlog2.pop %v38
    %v40 = vmul.f32 %v39, 0.6931472
    %v41 = vmul.f32 -0.5, %v28
    %v42 = vadd.f32 %v41, 1.0
    %v43 = vmul.f32 %v42, %v28
    %v44 = vand.u32 2147483647, %v28
    %vm45 = vcmp.lt.f32.partialorder %v44, 0.0004427343
    %v46 = vsel %vm45, %v43, %v40
    %vm47 = vcmp.gt.f32.partialorder %v21, 20.0
    %vm48 = vcmp.gt.f32.partialorder %v22, 20.0
    %v49 = vsel %vm47, %v21, %v37
    %v50 = vsel %vm48, %v22, %v46
    %51 = vst [vmem:[#allocation5] sm:$0xff] %v49
    %52 = vst [vmem:[#allocation5 + $0x8] sm:$0xff] %v50
    // Predicated region
    $region10: #{tpu_custom_call.1} parent=1 // pred_check
      _
    $region11: #{tpu_custom_call.1} parent=1 // pred_check_branch
      %54 = sbr.rel (0) target = $region13
    $region12: #{tpu_custom_call.1} parent=1 // pred_region
      %s56 = ssub.s32 256, 256
      %57 = vsyncadd [#allocation4], %s56
      %s59 = sshll.u32 [#allocation5], 4
      %s60 = int_to_ptr.vmem [resolvable:$true] %s59
      %62 = dma.vmem_to_hbm [thread:$0]  %s60, 256, %s1, [#allocation4]
    $region13: #{tpu_custom_call.1} parent=1 // pred_fallthru
      _
    // Predicated region
    $region14: #{tpu_custom_call.1} parent=1 // pred_check
      _
    $region15: #{tpu_custom_call.1} parent=1 // pred_check_branch
      %64 = sbr.rel (0) target = $region17
    $region16: #{tpu_custom_call.1} parent=1 // pred_region
      %65 = dma.done [#allocation4], 256
    $region17: #{tpu_custom_call.1} parent=1 // pred_fallthru
      _
    %66 = vsyncpa [#allocation3], 1
    %67 = vsyncpa [#allocation4], 1

</llo_original>
